<compile_context>
chip_gen: v5e
topology: v5e:2x2
jax: 0.10.0
libtpu: 0.0.40
codegen_flags: <defaults>
</compile_context>

<pallas_src>
import jax
import jax.numpy as jnp
from jax.experimental import pallas as pl
from jax.experimental.pallas import tpu as pltpu

# ----------------------------- configuration ---------------------------------
N = 2            # batch
IN_CH = 4        # in_channels
L = 16           # sequence length
HC = (8, 8)      # hc (all equal -> matches the module's hc[-1]/hc[i-1] indexing quirk)
HC0, HC1 = HC
KS = 3           # kernel_size
PAD = (KS - 1) // 2
S = 4            # size_restriction  (L % S == 0 -> each pooling bin is a plain mean)
HIDDEN = 32      # hidden_neurons
LATENT = 16      # latent_dimension (== HC0 + HC1, so the latent row fits the output slab)
EPS = 1e-5       # BatchNorm eps
NL = N * L       # 32 flattened (n, l) rows

# ------- packed parameter slab layout: (SLAB_ROWS, 32) f32, block offsets % 8 == 0 -------
SLAB_COLS = 32
W0_OFF = 0        # (KS*IN_CH, HC0) = (12, 8)  im2col weight of conv block -1
W1_OFF = 16       # (KS*HC0,  HC1)  = (24, 8)  fused-tap weight of conv block 0
PM1_OFF = 40      # (NL, NL) shift matrix: row r <- r-1 within each sample, zero at l == 0
PP1_OFF = 72      # (NL, NL) shift matrix: row r <- r+1 within each sample, zero at l == L-1
WL0_OFF = 104     # (S*HC1, HIDDEN) Linear-1 weight, rows permuted to kernel (s, c) order
WL1_OFF = 136     # (HIDDEN, HIDDEN)
WLF_OFF = 168     # (HIDDEN, LATENT)
VEC_OFF = 200     # 8 rows of vectors: s0, t0, s1, t1, b_l0, b_l1, b_lf, unused
SLAB_ROWS = 208


# ------------------------------ Pallas kernel --------------------------------
def encoder1d_kernel(xcol_ref, p_ref, out_ref):
    xcol = xcol_ref[...]                                             # (NL, KS*IN_CH)

    # ---- conv block -1: all K taps as one MXU matmul (im2col built in wrapper) ----
    w0 = p_ref[W0_OFF:W0_OFF + KS * IN_CH, 0:HC0]                    # (12, 8)
    s0 = p_ref[VEC_OFF + 0:VEC_OFF + 1, 0:HC0]                       # (1, 8)
    t0 = p_ref[VEC_OFF + 1:VEC_OFF + 2, 0:HC0]
    h0 = jnp.dot(xcol, w0, preferred_element_type=jnp.float32)       # (NL, 8)
    h0 = jnp.maximum(h0 * s0 + t0, 0.0)                              # bias+BN folded, ReLU

    # ---- conv block 0: shifted taps via constant shift matrices, one fused tap matmul ----
    pm1 = p_ref[PM1_OFF:PM1_OFF + NL, 0:NL]                          # (32, 32)
    pp1 = p_ref[PP1_OFF:PP1_OFF + NL, 0:NL]
    x_m1 = jnp.dot(pm1, h0, preferred_element_type=jnp.float32)      # h0 at l-1 (0 at l == 0)
    x_p1 = jnp.dot(pp1, h0, preferred_element_type=jnp.float32)      # h0 at l+1 (0 at l == L-1)
    taps = jnp.concatenate([x_m1, h0, x_p1], axis=1)                 # (NL, KS*HC0) = (32, 24)
    w1 = p_ref[W1_OFF:W1_OFF + KS * HC0, 0:HC1]                      # (24, 8)
    s1 = p_ref[VEC_OFF + 2:VEC_OFF + 3, 0:HC1]
    t1 = p_ref[VEC_OFF + 3:VEC_OFF + 4, 0:HC1]
    h1 = jnp.dot(taps, w1, preferred_element_type=jnp.float32)
    h1 = jnp.maximum(h1 * s1 + t1, 0.0)                              # (NL, 8)

    # ---- adaptive_avg_pool1d(S) + flatten in (s, c) order (Linear-1 rows pre-permuted).
    # Kept as sublane means + lane concat: folding into Linear-1 needs a sublane->lane
    # reshape ((NL, C) -> (N, L*C)) with uncertain Mosaic shape-cast support.
    h1_3d = h1.reshape(N, L, HC1)                                    # leading-dim split only
    w_bin = L // S
    bins = [jnp.mean(h1_3d[:, i * w_bin:(i + 1) * w_bin, :], axis=1) for i in range(S)]
    feat = jnp.concatenate(bins, axis=1)                             # (N, S*HC1)

    # ---- latent_operator MLP ----
    wl0 = p_ref[WL0_OFF:WL0_OFF + S * HC1, 0:HIDDEN]
    b0 = p_ref[VEC_OFF + 4:VEC_OFF + 5, 0:HIDDEN]
    z = jnp.maximum(jnp.dot(feat, wl0, preferred_element_type=jnp.float32) + b0, 0.0)
    wl1 = p_ref[WL1_OFF:WL1_OFF + HIDDEN, 0:HIDDEN]
    b1 = p_ref[VEC_OFF + 5:VEC_OFF + 6, 0:HIDDEN]
    z = jnp.maximum(jnp.dot(z, wl1, preferred_element_type=jnp.float32) + b1, 0.0)
    wlf = p_ref[WLF_OFF:WLF_OFF + HIDDEN, 0:LATENT]
    bf = p_ref[VEC_OFF + 6:VEC_OFF + 7, 0:LATENT]
    lat = jnp.dot(z, wlf, preferred_element_type=jnp.float32) + bf   # (N, LATENT)

    # ---- single packed output: rows 0:NL = [h0 | h1], rows NL:NL+N = latent (LATENT == 16) ----
    out_ref[...] = jnp.concatenate(
        [jnp.concatenate([h0, h1], axis=1), lat], axis=0)            # (NL + N, HC0 + HC1)


# ------------------------------ wrapper (glue) --------------------------------
def pack_params(conv_params, dense_params):
    """Fold conv bias + eval-mode BatchNorm into per-channel scale/shift and pack every
    parameter plus the two constant tap-shift matrices into one (SLAB_ROWS, 32) f32 slab."""
    slab = jnp.zeros((SLAB_ROWS, SLAB_COLS), jnp.float32)

    (W0, b0, g0, be0, m0, v0), (W1c, b1c, g1, be1, m1, v1) = conv_params
    s0 = g0 / jnp.sqrt(v0 + EPS)
    t0 = (b0 - m0) * s0 + be0
    s1 = g1 / jnp.sqrt(v1 + EPS)
    t1 = (b1c - m1) * s1 + be1
    # torch conv weight (Cout, Cin, K) -> im2col weight (K*Cin, Cout), column order k*Cin + c
    w0f = jnp.transpose(W0, (2, 1, 0)).reshape(KS * IN_CH, HC0)
    w1f = jnp.transpose(W1c, (2, 1, 0)).reshape(KS * HC0, HC1)
    slab = slab.at[W0_OFF:W0_OFF + KS * IN_CH, 0:HC0].set(w0f)
    slab = slab.at[W1_OFF:W1_OFF + KS * HC0, 0:HC1].set(w1f)

    # constant shift matrices implementing the +-1 taps with 'zeros' padding semantics
    r = jnp.arange(NL)
    pm1 = ((r[:, None] - 1 == r[None, :]) & ((r % L) != 0)[:, None]).astype(jnp.float32)
    pp1 = ((r[:, None] + 1 == r[None, :]) & ((r % L) != L - 1)[:, None]).astype(jnp.float32)
    slab = slab.at[PM1_OFF:PM1_OFF + NL, 0:NL].set(pm1)
    slab = slab.at[PP1_OFF:PP1_OFF + NL, 0:NL].set(pp1)

    # latent_operator: Linear-1 rows permuted from torch (c, s) flatten order to the
    # kernel's (s, c) feature order; remaining Linears transposed to (in, out)
    (Wl0, bl0), (Wl1, bl1), (Wlf, blf) = dense_params
    wl0k = jnp.transpose(Wl0.reshape(HIDDEN, HC1, S), (2, 1, 0)).reshape(S * HC1, HIDDEN)
    slab = slab.at[WL0_OFF:WL0_OFF + S * HC1, 0:HIDDEN].set(wl0k)
    slab = slab.at[WL1_OFF:WL1_OFF + HIDDEN, 0:HIDDEN].set(Wl1.T)
    slab = slab.at[WLF_OFF:WLF_OFF + HIDDEN, 0:LATENT].set(Wlf.T)

    # per-channel scale/shift rows and MLP bias rows
    slab = slab.at[VEC_OFF + 0, 0:HC0].set(s0)
    slab = slab.at[VEC_OFF + 1, 0:HC0].set(t0)
    slab = slab.at[VEC_OFF + 2, 0:HC1].set(s1)
    slab = slab.at[VEC_OFF + 3, 0:HC1].set(t1)
    slab = slab.at[VEC_OFF + 4, 0:HIDDEN].set(bl0)
    slab = slab.at[VEC_OFF + 5, 0:HIDDEN].set(bl1)
    slab = slab.at[VEC_OFF + 6, 0:LATENT].set(blf)
    return slab


def _im2col(x_ncl):
    """(N, Cin, L) -> (N*L, KS*Cin) zero-padded im2col matrix, row order n*L + l."""
    x_nlc = jnp.transpose(x_ncl, (0, 2, 1)).astype(jnp.float32)      # (N, L, Cin)
    x_pad = jnp.pad(x_nlc, ((0, 0), (PAD, PAD), (0, 0)))             # 'zeros' padding mode
    cols = [x_pad[:, k:k + L, :] for k in range(KS)]
    return jnp.concatenate(cols, axis=-1).reshape(NL, KS * IN_CH)


@jax.jit
def encoder1d_forward(x_ncl, slab):
    """x_ncl: (N, C_in, L).  Returns (latent (N, LATENT), [conv outputs in torch NCL layout])."""
    x_col = _im2col(x_ncl)

    flops = 2 * (NL * KS * IN_CH * HC0 + 2 * NL * NL * HC0 + NL * KS * HC0 * HC1
                 + N * S * HC1 * HIDDEN + N * HIDDEN * HIDDEN + N * HIDDEN * LATENT)
    bytes_accessed = 4 * (NL * KS * IN_CH + SLAB_ROWS * SLAB_COLS + (NL + N) * (HC0 + HC1))

    vmem = pl.BlockSpec(memory_space=pltpu.MemorySpace.VMEM)
    packed = pl.pallas_call(
        encoder1d_kernel,
        out_shape=jax.ShapeDtypeStruct((NL + N, HC0 + HC1), jnp.float32),
        in_specs=[vmem, vmem],
        out_specs=vmem,
        cost_estimate=pl.CostEstimate(flops=flops, transcendentals=0,
                                      bytes_accessed=bytes_accessed),
    )(x_col, slab)

    conv = packed[0:NL, :]
    o0 = jnp.transpose(conv[:, 0:HC0].reshape(N, L, HC0), (0, 2, 1))          # back to NCL
    o1 = jnp.transpose(conv[:, HC0:HC0 + HC1].reshape(N, L, HC1), (0, 2, 1))
    lat = packed[NL:NL + N, 0:LATENT]
    return lat, [o0, o1]


# --------------------------- pure-JAX reference -------------------------------
def reference_forward(x_ncl, conv_params, dense_params):
    h = x_ncl.astype(jnp.float32)
    outs = []
    for (W, b, gamma, beta, mean, var) in conv_params:
        h = jax.lax.conv_general_dilated(
            h, W, window_strides=(1,), padding=[(PAD, PAD)],
            dimension_numbers=('NCH', 'OIH', 'NCH'))
        h = h + b[None, :, None]
        h = (h - mean[None, :, None]) / jnp.sqrt(var[None, :, None] + EPS) \
            * gamma[None, :, None] + beta[None, :, None]
        h = jnp.maximum(h, 0.0)
        outs.append(h)
    n, c, l = h.shape
    pooled = h.reshape(n, c, S, l // S).mean(-1)              # adaptive_avg_pool1d (divisible)
    feat = pooled.reshape(n, c * S)                           # x.view(N, -1) -> (C, S) order
    z = feat
    for (W, b) in dense_params[:-1]:
        z = jnp.maximum(z @ W.T + b, 0.0)
    Wf, bf = dense_params[-1]
    return z @ Wf.T + bf, outs


# ------------------------------- main -----------------------------------------
if __name__ == "__main__":
    key = jax.random.PRNGKey(0)
    keys = jax.random.split(key, 16)
    ki = iter(keys)

    def rnd(k, shape, scale=0.1):
        return jax.random.normal(k, shape, jnp.float32) * scale

    # conv block params: (W (Cout,Cin,K), bias, bn_gamma, bn_beta, running_mean, running_var)
    conv_params = []
    in_c = IN_CH
    for c_out in HC:
        W = rnd(next(ki), (c_out, in_c, KS))
        b = rnd(next(ki), (c_out,))
        gamma = 1.0 + rnd(next(ki), (c_out,))
        beta = rnd(next(ki), (c_out,))
        mean = jnp.zeros((c_out,), jnp.float32)               # fresh BN running stats (eval mode)
        var = jnp.ones((c_out,), jnp.float32)
        conv_params.append((W, b, gamma, beta, mean, var))
        in_c = c_out

    # latent_operator: Linear(HC[-1]*S -> HIDDEN), Linear(HIDDEN -> HIDDEN), Linear(HIDDEN -> LATENT)
    dense_params = [
        (rnd(next(ki), (HIDDEN, HC[-1] * S)), rnd(next(ki), (HIDDEN,))),
        (rnd(next(ki), (HIDDEN, HIDDEN)), rnd(next(ki), (HIDDEN,))),
        (rnd(next(ki), (LATENT, HIDDEN)), rnd(next(ki), (LATENT,))),
    ]

    x = jax.random.normal(next(ki), (N, IN_CH, L), jnp.float32)

    slab = pack_params(conv_params, dense_params)             # packed once, reused across calls
    lat, outs = encoder1d_forward(x, slab)
    jax.block_until_ready(lat)
    for o in outs:
        jax.block_until_ready(o)

    lat_ref, outs_ref = reference_forward(x, conv_params, dense_params)
    assert lat.shape == (N, LATENT)
    assert outs[0].shape == (N, HC[0], L) and outs[1].shape == (N, HC[1], L)
    assert jnp.allclose(lat, lat_ref, rtol=1e-4, atol=1e-5)
    for o, o_ref in zip(outs, outs_ref):
        assert jnp.allclose(o, o_ref, rtol=1e-4, atol=1e-5)

    print("KERNEL_OK")
</pallas_src>

<mosaic_0001>
module attributes {stable_mosaic.version = 11 : i64} {
  func.func @encoder1d_kernel(%arg0: memref<32x12xf32, #tpu.memory_space<vmem>>, %arg1: memref<208x32xf32, #tpu.memory_space<vmem>>, %arg2: memref<34x16xf32, #tpu.memory_space<vmem>>) attributes {dimension_semantics = [], scalar_prefetch = 0 : i64, scratch_operands = 0 : i64, tpu.core_type = #tpu.core_type<tc>} {
    %c0 = arith.constant 0 : index
    %c0_0 = arith.constant 0 : index
    %0 = vector.load %arg0[%c0, %c0_0] : memref<32x12xf32, #tpu.memory_space<vmem>>, vector<32x12xf32>
    %c0_1 = arith.constant 0 : index
    %c0_2 = arith.constant 0 : index
    %1 = vector.load %arg1[%c0_1, %c0_2] : memref<208x32xf32, #tpu.memory_space<vmem>>, vector<12x8xf32>
    %c200 = arith.constant 200 : index
    %c0_3 = arith.constant 0 : index
    %2 = vector.load %arg1[%c200, %c0_3] : memref<208x32xf32, #tpu.memory_space<vmem>>, vector<1x8xf32>
    %c201 = arith.constant 201 : index
    %c0_4 = arith.constant 0 : index
    %3 = vector.load %arg1[%c201, %c0_4] : memref<208x32xf32, #tpu.memory_space<vmem>>, vector<1x8xf32>
    %cst = arith.constant dense<0.000000e+00> : vector<32x8xf32>
    %4 = tpu.matmul %0, %1, %cst {dimension_numbers = #tpu.dot_dimension_numbers<[1], [0], [0], [1], [0, 0, 1, 1], [], []>} : vector<32x12xf32>, vector<12x8xf32>, vector<32x8xf32> -> vector<32x8xf32>
    %5 = vector.broadcast %2 : vector<1x8xf32> to vector<32x8xf32>
    %6 = arith.mulf %4, %5 : vector<32x8xf32>
    %7 = vector.broadcast %3 : vector<1x8xf32> to vector<32x8xf32>
    %8 = arith.addf %6, %7 : vector<32x8xf32>
    %cst_5 = arith.constant 0.000000e+00 : f32
    %9 = vector.broadcast %cst_5 : f32 to vector<32x8xf32>
    %10 = arith.maximumf %8, %9 : vector<32x8xf32>
    %c40 = arith.constant 40 : index
    %c0_6 = arith.constant 0 : index
    %11 = vector.load %arg1[%c40, %c0_6] : memref<208x32xf32, #tpu.memory_space<vmem>>, vector<32x32xf32>
    %c72 = arith.constant 72 : index
    %c0_7 = arith.constant 0 : index
    %12 = vector.load %arg1[%c72, %c0_7] : memref<208x32xf32, #tpu.memory_space<vmem>>, vector<32x32xf32>
    %cst_8 = arith.constant dense<0.000000e+00> : vector<32x8xf32>
    %13 = tpu.matmul %11, %10, %cst_8 {dimension_numbers = #tpu.dot_dimension_numbers<[1], [0], [0], [1], [0, 0, 1, 1], [], []>} : vector<32x32xf32>, vector<32x8xf32>, vector<32x8xf32> -> vector<32x8xf32>
    %cst_9 = arith.constant dense<0.000000e+00> : vector<32x8xf32>
    %14 = tpu.matmul %12, %10, %cst_9 {dimension_numbers = #tpu.dot_dimension_numbers<[1], [0], [0], [1], [0, 0, 1, 1], [], []>} : vector<32x32xf32>, vector<32x8xf32>, vector<32x8xf32> -> vector<32x8xf32>
    %15 = tpu.concatenate %13, %10, %14 in 1 : vector<32x8xf32>, vector<32x8xf32>, vector<32x8xf32> -> vector<32x24xf32>
    %c16 = arith.constant 16 : index
    %c0_10 = arith.constant 0 : index
    %16 = vector.load %arg1[%c16, %c0_10] : memref<208x32xf32, #tpu.memory_space<vmem>>, vector<24x8xf32>
    %c202 = arith.constant 202 : index
    %c0_11 = arith.constant 0 : index
    %17 = vector.load %arg1[%c202, %c0_11] : memref<208x32xf32, #tpu.memory_space<vmem>>, vector<1x8xf32>
    %c203 = arith.constant 203 : index
    %c0_12 = arith.constant 0 : index
    %18 = vector.load %arg1[%c203, %c0_12] : memref<208x32xf32, #tpu.memory_space<vmem>>, vector<1x8xf32>
    %cst_13 = arith.constant dense<0.000000e+00> : vector<32x8xf32>
    %19 = tpu.matmul %15, %16, %cst_13 {dimension_numbers = #tpu.dot_dimension_numbers<[1], [0], [0], [1], [0, 0, 1, 1], [], []>} : vector<32x24xf32>, vector<24x8xf32>, vector<32x8xf32> -> vector<32x8xf32>
    %20 = vector.broadcast %17 : vector<1x8xf32> to vector<32x8xf32>
    %21 = arith.mulf %19, %20 : vector<32x8xf32>
    %22 = vector.broadcast %18 : vector<1x8xf32> to vector<32x8xf32>
    %23 = arith.addf %21, %22 : vector<32x8xf32>
    %cst_14 = arith.constant 0.000000e+00 : f32
    %24 = vector.broadcast %cst_14 : f32 to vector<32x8xf32>
    %25 = arith.maximumf %23, %24 : vector<32x8xf32>
    %26 = vector.shape_cast %25 : vector<32x8xf32> to vector<2x16x8xf32>
    %27 = vector.extract_strided_slice %26 {offsets = [0, 0, 0], sizes = [2, 4, 8], strides = [1, 1, 1]} : vector<2x16x8xf32> to vector<2x4x8xf32>
    %cst_15 = arith.constant dense<0.000000e+00> : vector<2x8xf32>
    %28 = vector.multi_reduction <add>, %27, %cst_15 [1] : vector<2x4x8xf32> to vector<2x8xf32>
    %cst_16 = arith.constant 4.000000e+00 : f32
    %29 = vector.broadcast %cst_16 : f32 to vector<2x8xf32>
    %30 = arith.divf %28, %29 : vector<2x8xf32>
    %31 = vector.extract_strided_slice %26 {offsets = [0, 4, 0], sizes = [2, 4, 8], strides = [1, 1, 1]} : vector<2x16x8xf32> to vector<2x4x8xf32>
    %cst_17 = arith.constant dense<0.000000e+00> : vector<2x8xf32>
    %32 = vector.multi_reduction <add>, %31, %cst_17 [1] : vector<2x4x8xf32> to vector<2x8xf32>
    %cst_18 = arith.constant 4.000000e+00 : f32
    %33 = vector.broadcast %cst_18 : f32 to vector<2x8xf32>
    %34 = arith.divf %32, %33 : vector<2x8xf32>
    %35 = vector.extract_strided_slice %26 {offsets = [0, 8, 0], sizes = [2, 4, 8], strides = [1, 1, 1]} : vector<2x16x8xf32> to vector<2x4x8xf32>
    %cst_19 = arith.constant dense<0.000000e+00> : vector<2x8xf32>
    %36 = vector.multi_reduction <add>, %35, %cst_19 [1] : vector<2x4x8xf32> to vector<2x8xf32>
    %cst_20 = arith.constant 4.000000e+00 : f32
    %37 = vector.broadcast %cst_20 : f32 to vector<2x8xf32>
    %38 = arith.divf %36, %37 : vector<2x8xf32>
    %39 = vector.extract_strided_slice %26 {offsets = [0, 12, 0], sizes = [2, 4, 8], strides = [1, 1, 1]} : vector<2x16x8xf32> to vector<2x4x8xf32>
    %cst_21 = arith.constant dense<0.000000e+00> : vector<2x8xf32>
    %40 = vector.multi_reduction <add>, %39, %cst_21 [1] : vector<2x4x8xf32> to vector<2x8xf32>
    %cst_22 = arith.constant 4.000000e+00 : f32
    %41 = vector.broadcast %cst_22 : f32 to vector<2x8xf32>
    %42 = arith.divf %40, %41 : vector<2x8xf32>
    %43 = tpu.concatenate %30, %34, %38, %42 in 1 : vector<2x8xf32>, vector<2x8xf32>, vector<2x8xf32>, vector<2x8xf32> -> vector<2x32xf32>
    %c104 = arith.constant 104 : index
    %c0_23 = arith.constant 0 : index
    %44 = vector.load %arg1[%c104, %c0_23] : memref<208x32xf32, #tpu.memory_space<vmem>>, vector<32x32xf32>
    %c204 = arith.constant 204 : index
    %c0_24 = arith.constant 0 : index
    %45 = vector.load %arg1[%c204, %c0_24] : memref<208x32xf32, #tpu.memory_space<vmem>>, vector<1x32xf32>
    %cst_25 = arith.constant dense<0.000000e+00> : vector<2x32xf32>
    %46 = tpu.matmul %43, %44, %cst_25 {dimension_numbers = #tpu.dot_dimension_numbers<[1], [0], [0], [1], [0, 0, 1, 1], [], []>} : vector<2x32xf32>, vector<32x32xf32>, vector<2x32xf32> -> vector<2x32xf32>
    %47 = vector.broadcast %45 : vector<1x32xf32> to vector<2x32xf32>
    %48 = arith.addf %46, %47 : vector<2x32xf32>
    %cst_26 = arith.constant 0.000000e+00 : f32
    %49 = vector.broadcast %cst_26 : f32 to vector<2x32xf32>
    %50 = arith.maximumf %48, %49 : vector<2x32xf32>
    %c136 = arith.constant 136 : index
    %c0_27 = arith.constant 0 : index
    %51 = vector.load %arg1[%c136, %c0_27] : memref<208x32xf32, #tpu.memory_space<vmem>>, vector<32x32xf32>
    %c205 = arith.constant 205 : index
    %c0_28 = arith.constant 0 : index
    %52 = vector.load %arg1[%c205, %c0_28] : memref<208x32xf32, #tpu.memory_space<vmem>>, vector<1x32xf32>
    %cst_29 = arith.constant dense<0.000000e+00> : vector<2x32xf32>
    %53 = tpu.matmul %50, %51, %cst_29 {dimension_numbers = #tpu.dot_dimension_numbers<[1], [0], [0], [1], [0, 0, 1, 1], [], []>} : vector<2x32xf32>, vector<32x32xf32>, vector<2x32xf32> -> vector<2x32xf32>
    %54 = vector.broadcast %52 : vector<1x32xf32> to vector<2x32xf32>
    %55 = arith.addf %53, %54 : vector<2x32xf32>
    %cst_30 = arith.constant 0.000000e+00 : f32
    %56 = vector.broadcast %cst_30 : f32 to vector<2x32xf32>
    %57 = arith.maximumf %55, %56 : vector<2x32xf32>
    %c168 = arith.constant 168 : index
    %c0_31 = arith.constant 0 : index
    %58 = vector.load %arg1[%c168, %c0_31] : memref<208x32xf32, #tpu.memory_space<vmem>>, vector<32x16xf32>
    %c206 = arith.constant 206 : index
    %c0_32 = arith.constant 0 : index
    %59 = vector.load %arg1[%c206, %c0_32] : memref<208x32xf32, #tpu.memory_space<vmem>>, vector<1x16xf32>
    %cst_33 = arith.constant dense<0.000000e+00> : vector<2x16xf32>
    %60 = tpu.matmul %57, %58, %cst_33 {dimension_numbers = #tpu.dot_dimension_numbers<[1], [0], [0], [1], [0, 0, 1, 1], [], []>} : vector<2x32xf32>, vector<32x16xf32>, vector<2x16xf32> -> vector<2x16xf32>
    %61 = vector.broadcast %59 : vector<1x16xf32> to vector<2x16xf32>
    %62 = arith.addf %60, %61 : vector<2x16xf32>
    %63 = tpu.concatenate %10, %25 in 1 : vector<32x8xf32>, vector<32x8xf32> -> vector<32x16xf32>
    %64 = tpu.concatenate %63, %62 in 0 : vector<32x16xf32>, vector<2x16xf32> -> vector<34x16xf32>
    %c0_34 = arith.constant 0 : index
    %c0_35 = arith.constant 0 : index
    %65 = vector.load %arg2[%c0_34, %c0_35] : memref<34x16xf32, #tpu.memory_space<vmem>>, vector<34x16xf32>
    tpu.vector_store %arg2[%c0_34, %c0_35], %64 {strides = array<i32>} : memref<34x16xf32, #tpu.memory_space<vmem>>, vector<34x16xf32>,
    return
  }
}

</mosaic_0001>

<llo_original>
// kernel: encoder1d_forward.1
$region0: #{encoder1d_forward.1}
  #allocation0 [shape = 'u32[]', space=smem, size = 0x4, offset = 0x4, fixed_abs, tag = 'smem constant byte address 0x4 - core index']
  #allocation1 [shape = 'u32[72,128]{1,0:T(1,128)}', space=vmem, size = 0x9000, scoped, tag = 'internal scratch']
  %s0 = inlined_call_operand.vmem [shape: f32[32,12], index: 0, kind: input, shape index: {}]
  %s1 = inlined_call_operand.vmem [shape: f32[208,32], index: 1, kind: input, shape index: {}]
  %s2 = inlined_call_operand.vmem [shape: f32[34,16], index: 2, kind: output, shape index: {}]
  %s3 = sld [smem:[#allocation0]]
  $region18: #{encoder1d_forward.1} parent=0
    _
  %s5 = ssub.s32 1, %s3
  %s6 = scalar_select 0, %s5, %s3
  // Predicated region
  $region2: #{encoder1d_forward.1} parent=0 // pred_check
    _
  $region3: #{encoder1d_forward.1} parent=0 // pred_check_branch
    %8 = sbr.rel (0) target = $region5
  $region4: #{encoder1d_forward.1} parent=0 // pred_region
    _
  $region5: #{encoder1d_forward.1} parent=0 // pred_fallthru
    _
  // Predicated region
  $region6: #{encoder1d_forward.1} parent=0 // pred_check
    _
  $region7: #{encoder1d_forward.1} parent=0 // pred_check_branch
    %10 = sbr.rel (0) target = $region9
  $region8: #{encoder1d_forward.1} parent=0 // pred_region
    _
  $region9: #{encoder1d_forward.1} parent=0 // pred_fallthru
    _
  %v11 = vld [vmem:[%s0] sm:$0xff]
  %v12 = vld [vmem:[%s0 + $0x8] sm:$0xff]
  %v13 = vld [vmem:[%s0 + $0x10] sm:$0xff]
  %v14 = vld [vmem:[%s0 + $0x18] sm:$0xff]
  %v15 = vld [vmem:[%s1] sm:$0xff]
  %v16 = vld [vmem:[%s1 + $0x8] sm:$0xf]
  %v17 = vld [vmem:[%s1 + $0xc8] sm:$0x1]
  %v18 = vld [vmem:[%s1 + $0xc9] sm:$0x1]
  %vm19 = vcmask 97280
  %v21 = vsel %vm19, %v11, 0
  %v24 = vsel %vm19, %v12, 0
  %v27 = vsel %vm19, %v13, 0
  %v30 = vsel %vm19, %v14, 0
  %vm32 = vcmask 1043456
  %v34 = vsel %vm32, %v16, 0
  %36 = vmatpush.msra.mxu0 0.0
  %37 = vmatpush.msra.mxu0 0.0
  %38 = vmatpush.msra.mxu0 0.0
  %39 = vmatpush.msra.mxu0 0.0
  %40 = vmatpush.msra.mxu0 0.0
  %41 = vmatpush.msra.mxu0 0.0
  %42 = vmatpush.msra.mxu0 0.0
  %43 = vmatpush.msra.mxu0 0.0
  %44 = vmatpush.msra.mxu0 0.0
  %45 = vmatpush.msra.mxu0 0.0
  %46 = vmatpush.msra.mxu0 0.0
  %47 = vmatpush.msra.mxu0 0.0
  %48 = vmatpush.msra.mxu0 0.0
  %49 = vmatpush.msra.mxu0 0.0
  %50 = vmatpush.msra.mxu0 %v34
  %51 = vmatpush.msra.mxu0 %v15
  %52 = vmatmul.f32.gmra.mxu0 %v21
  %v53 = vpop.f32.mrf.mxu0
  %v54 = vadd.f32 0.0, %v53
  %55 = vmatmul.f32.gmra.mxu0 %v24
  %v56 = vpop.f32.mrf.mxu0
  %v57 = vadd.f32 0.0, %v56
  %58 = vmatmul.f32.gmra.mxu0 %v27
  %v59 = vpop.f32.mrf.mxu0
  %v60 = vadd.f32 0.0, %v59
  %61 = vmatmul.f32.gmra.mxu0 %v30
  %v62 = vpop.f32.mrf.mxu0
  %v63 = vadd.f32 0.0, %v62
  %64 = vdwg.mxu0
  %v65 = vperm.slane %v17, 0
  %v66 = vmul.f32 %v54, %v65
  %v67 = vmul.f32 %v57, %v65
  %v68 = vmul.f32 %v60, %v65
  %v69 = vmul.f32 %v63, %v65
  %v70 = vperm.slane %v18, 0
  %v71 = vadd.f32 %v66, %v70
  %v72 = vadd.f32 %v67, %v70
  %v73 = vadd.f32 %v68, %v70
  %v74 = vadd.f32 %v69, %v70
  %v75 = vmax.f32 %v71, 0.0
  %v76 = vmax.f32 %v72, 0.0
  %v77 = vmax.f32 %v73, 0.0
  %v78 = vmax.f32 %v74, 0.0
  %v79 = vld [vmem:[%s1 + $0x28] sm:$0xff]
  %v80 = vld [vmem:[%s1 + $0x30] sm:$0xff]
  %v81 = vld [vmem:[%s1 + $0x38] sm:$0xff]
  %v82 = vld [vmem:[%s1 + $0x40] sm:$0xff]
  %v83 = vld [vmem:[%s1 + $0x48] sm:$0xff]
  %v84 = vld [vmem:[%s1 + $0x50] sm:$0xff]
  %v85 = vld [vmem:[%s1 + $0x58] sm:$0xff]
  %v86 = vld [vmem:[%s1 + $0x60] sm:$0xff]
  %vm87 = vcmask 261120
  %v89 = vsel %vm87, %v79, 0
  %v92 = vsel %vm87, %v80, 0
  %v95 = vsel %vm87, %v81, 0
  %v98 = vsel %vm87, %v82, 0
  %100 = vmatpush.msra.mxu0 0.0
  %101 = vmatpush.msra.mxu0 0.0
  %102 = vmatpush.msra.mxu0 0.0
  %103 = vmatpush.msra.mxu0 0.0
  %104 = vmatpush.msra.mxu0 0.0
  %105 = vmatpush.msra.mxu0 0.0
  %106 = vmatpush.msra.mxu0 0.0
  %107 = vmatpush.msra.mxu0 0.0
  %108 = vmatpush.msra.mxu0 0.0
  %109 = vmatpush.msra.mxu0 0.0
  %110 = vmatpush.msra.mxu0 0.0
  %111 = vmatpush.msra.mxu0 0.0
  %112 = vmatpush.msra.mxu0 %v78
  %113 = vmatpush.msra.mxu0 %v77
  %114 = vmatpush.msra.mxu0 %v76
  %115 = vmatpush.msra.mxu0 %v75
  %116 = vmatmul.f32.gmra.mxu0 %v89
  %v117 = vpop.f32.mrf.mxu0
  %v118 = vadd.f32 0.0, %v117
  %119 = vmatmul.f32.gmra.mxu0 %v92
  %v120 = vpop.f32.mrf.mxu0
  %v121 = vadd.f32 0.0, %v120
  %122 = vmatmul.f32.gmra.mxu0 %v95
  %v123 = vpop.f32.mrf.mxu0
  %v124 = vadd.f32 0.0, %v123
  %125 = vmatmul.f32.gmra.mxu0 %v98
  %v126 = vpop.f32.mrf.mxu0
  %v127 = vadd.f32 0.0, %v126
  %128 = vdwg.mxu0
  %v130 = vsel %vm87, %v83, 0
  %v133 = vsel %vm87, %v84, 0
  %v136 = vsel %vm87, %v85, 0
  %v139 = vsel %vm87, %v86, 0
  %141 = vmatpush.msra.mxu0 0.0
  %142 = vmatpush.msra.mxu0 0.0
  %143 = vmatpush.msra.mxu0 0.0
  %144 = vmatpush.msra.mxu0 0.0
  %145 = vmatpush.msra.mxu0 0.0
  %146 = vmatpush.msra.mxu0 0.0
  %147 = vmatpush.msra.mxu0 0.0
  %148 = vmatpush.msra.mxu0 0.0
  %149 = vmatpush.msra.mxu0 0.0
  %150 = vmatpush.msra.mxu0 0.0
  %151 = vmatpush.msra.mxu0 0.0
  %152 = vmatpush.msra.mxu0 0.0
  %153 = vmatpush.msra.mxu0 %v78
  %154 = vmatpush.msra.mxu0 %v77
  %155 = vmatpush.msra.mxu0 %v76
  %156 = vmatpush.msra.mxu0 %v75
  %157 = vmatmul.f32.gmra.mxu0 %v130
  %v158 = vpop.f32.mrf.mxu0
  %v159 = vadd.f32 0.0, %v158
  %160 = vmatmul.f32.gmra.mxu0 %v133
  %v161 = vpop.f32.mrf.mxu0
  %v162 = vadd.f32 0.0, %v161
  %163 = vmatmul.f32.gmra.mxu0 %v136
  %v164 = vpop.f32.mrf.mxu0
  %v165 = vadd.f32 0.0, %v164
  %166 = vmatmul.f32.gmra.mxu0 %v139
  %v167 = vpop.f32.mrf.mxu0
  %v168 = vadd.f32 0.0, %v167
  %169 = vdwg.mxu0
  %174 = vrot.lane.b32.xlu0 %v75, 8
  %v175 = vpop.permute.xlu0 %174
  %176 = vrot.lane.b32.xlu0 %v76, 8
  %v177 = vpop.permute.xlu0 %176
  %178 = vrot.lane.b32.xlu0 %v77, 8
  %v179 = vpop.permute.xlu0 %178
  %180 = vrot.lane.b32.xlu0 %v78, 8
  %v181 = vpop.permute.xlu0 %180
  %190 = vrot.lane.b32.xlu0 %v159, 16
  %v191 = vpop.permute.xlu0 %190
  %192 = vrot.lane.b32.xlu0 %v162, 16
  %v193 = vpop.permute.xlu0 %192
  %194 = vrot.lane.b32.xlu0 %v165, 16
  %v195 = vpop.permute.xlu0 %194
  %196 = vrot.lane.b32.xlu0 %v168, 16
  %v197 = vpop.permute.xlu0 %196
  %vm202 = vcmask 64512
  %v203 = vsel %vm202, %v118, %v175
  %v204 = vsel %vm202, %v121, %v177
  %v205 = vsel %vm202, %v124, %v179
  %v206 = vsel %vm202, %v127, %v181
  %vm207 = vcmask 130048
  %v208 = vsel %vm207, %v203, %v191
  %v209 = vsel %vm207, %v204, %v193
  %v210 = vsel %vm207, %v205, %v195
  %v211 = vsel %vm207, %v206, %v197
  %v212 = vld [vmem:[%s1 + $0x10] sm:$0xff]
  %v213 = vld [vmem:[%s1 + $0x18] sm:$0xff]
  %v214 = vld [vmem:[%s1 + $0x20] sm:$0xff]
  %v215 = vld [vmem:[%s1 + $0xca] sm:$0x1]
  %v216 = vld [vmem:[%s1 + $0xcb] sm:$0x1]
  %vm217 = vcmask 195584
  %v219 = vsel %vm217, %v208, 0
  %v222 = vsel %vm217, %v209, 0
  %v225 = vsel %vm217, %v210, 0
  %v228 = vsel %vm217, %v211, 0
  %230 = vmatpush.msra.mxu0 0.0
  %231 = vmatpush.msra.mxu0 0.0
  %232 = vmatpush.msra.mxu0 0.0
  %233 = vmatpush.msra.mxu0 0.0
  %234 = vmatpush.msra.mxu0 0.0
  %235 = vmatpush.msra.mxu0 0.0
  %236 = vmatpush.msra.mxu0 0.0
  %237 = vmatpush.msra.mxu0 0.0
  %238 = vmatpush.msra.mxu0 0.0
  %239 = vmatpush.msra.mxu0 0.0
  %240 = vmatpush.msra.mxu0 0.0
  %241 = vmatpush.msra.mxu0 0.0
  %242 = vmatpush.msra.mxu0 0.0
  %243 = vmatpush.msra.mxu0 %v214
  %244 = vmatpush.msra.mxu0 %v213
  %245 = vmatpush.msra.mxu0 %v212
  %246 = vmatmul.f32.gmra.mxu0 %v219
  %v247 = vpop.f32.mrf.mxu0
  %v248 = vadd.f32 0.0, %v247
  %249 = vmatmul.f32.gmra.mxu0 %v222
  %v250 = vpop.f32.mrf.mxu0
  %v251 = vadd.f32 0.0, %v250
  %252 = vmatmul.f32.gmra.mxu0 %v225
  %v253 = vpop.f32.mrf.mxu0
  %v254 = vadd.f32 0.0, %v253
  %255 = vmatmul.f32.gmra.mxu0 %v228
  %v256 = vpop.f32.mrf.mxu0
  %v257 = vadd.f32 0.0, %v256
  %258 = vdwg.mxu0
  %v259 = vperm.slane %v215, 0
  %v260 = vmul.f32 %v248, %v259
  %v261 = vmul.f32 %v251, %v259
  %v262 = vmul.f32 %v254, %v259
  %v263 = vmul.f32 %v257, %v259
  %v264 = vperm.slane %v216, 0
  %v265 = vadd.f32 %v260, %v264
  %v266 = vadd.f32 %v261, %v264
  %v267 = vadd.f32 %v262, %v264
  %v268 = vadd.f32 %v263, %v264
  %v269 = vmax.f32 %v265, 0.0
  %v270 = vmax.f32 %v266, 0.0
  %v271 = vmax.f32 %v267, 0.0
  %v272 = vmax.f32 %v268, 0.0
  %vm273 = vcmask 60416
  %v274 = vsel %vm273, %v269, 0.0
  %v275 = vrot.slane %v274, 4
  %v276 = vadd.f32 %v274, %v275
  %v277 = vrot.slane %v276, 2
  %v278 = vadd.f32 %v276, %v277
  %v279 = vrot.slane %v278, 1
  %v280 = vadd.f32 %v278, %v279
  %v281 = vsel %vm273, %v271, 0.0
  %v282 = vrot.slane %v281, 4
  %v283 = vadd.f32 %v281, %v282
  %v284 = vrot.slane %v283, 2
  %v285 = vadd.f32 %v283, %v284
  %v286 = vrot.slane %v285, 1
  %v287 = vadd.f32 %v285, %v286
  %v288 = vrcp.pop 4.0
  %v289 = vmul.f32 4.0, %v288
  %v290 = vsub.f32 1.0, %v289
  %v291 = vmul.f32 %v288, %v290
  %v292 = vadd.f32 %v288, %v291
  %vm293 = vweird.f32 %v288
  %v294 = vsel %vm293, %v288, %v292
  %v295 = vmul.f32 %v280, %v294
  %v296 = vmul.f32 %v287, %v294
  %v299 = vrot.slane %v269, 4
  %v300 = vrot.slane %v271, 4
  %v303 = vsel %vm273, %v299, 0.0
  %v304 = vrot.slane %v303, 4
  %v305 = vadd.f32 %v303, %v304
  %v306 = vrot.slane %v305, 2
  %v307 = vadd.f32 %v305, %v306
  %v308 = vrot.slane %v307, 1
  %v309 = vadd.f32 %v307, %v308
  %v310 = vsel %vm273, %v300, 0.0
  %v311 = vrot.slane %v310, 4
  %v312 = vadd.f32 %v310, %v311
  %v313 = vrot.slane %v312, 2
  %v314 = vadd.f32 %v312, %v313
  %v315 = vrot.slane %v314, 1
  %v316 = vadd.f32 %v314, %v315
  %v317 = vmul.f32 %v309, %v294
  %v318 = vmul.f32 %v316, %v294
  %v319 = vsel %vm273, %v270, 0.0
  %v320 = vrot.slane %v319, 4
  %v321 = vadd.f32 %v319, %v320
  %v322 = vrot.slane %v321, 2
  %v323 = vadd.f32 %v321, %v322
  %v324 = vrot.slane %v323, 1
  %v325 = vadd.f32 %v323, %v324
  %v326 = vsel %vm273, %v272, 0.0
  %v327 = vrot.slane %v326, 4
  %v328 = vadd.f32 %v326, %v327
  %v329 = vrot.slane %v328, 2
  %v330 = vadd.f32 %v328, %v329
  %v331 = vrot.slane %v330, 1
  %v332 = vadd.f32 %v330, %v331
  %v333 = vmul.f32 %v325, %v294
  %v334 = vmul.f32 %v332, %v294
  %v337 = vrot.slane %v270, 4
  %v338 = vrot.slane %v272, 4
  %v341 = vsel %vm273, %v337, 0.0
  %v342 = vrot.slane %v341, 4
  %v343 = vadd.f32 %v341, %v342
  %v344 = vrot.slane %v343, 2
  %v345 = vadd.f32 %v343, %v344
  %v346 = vrot.slane %v345, 1
  %v347 = vadd.f32 %v345, %v346
  %v348 = vsel %vm273, %v338, 0.0
  %v349 = vrot.slane %v348, 4
  %v350 = vadd.f32 %v348, %v349
  %v351 = vrot.slane %v350, 2
  %v352 = vadd.f32 %v350, %v351
  %v353 = vrot.slane %v352, 1
  %v354 = vadd.f32 %v352, %v353
  %v355 = vmul.f32 %v347, %v294
  %v356 = vmul.f32 %v354, %v294
  %vm359 = vcmask 1041409
  %v360 = vsel %vm359, %v296, %v295
  %v364 = vsel %vm359, %v318, %v317
  %365 = vrot.lane.b32.xlu0 %v364, 8
  %v366 = vpop.permute.xlu0 %365
  %v370 = vsel %vm359, %v334, %v333
  %371 = vrot.lane.b32.xlu0 %v370, 16
  %v372 = vpop.permute.xlu0 %371
  %v376 = vsel %vm359, %v356, %v355
  %377 = vrot.lane.b32.xlu0 %v376, 24
  %v378 = vpop.permute.xlu0 %377
  %v380 = vsel %vm202, %v360, %v366
  %v381 = vsel %vm207, %v380, %v372
  %v382 = vsel %vm217, %v381, %v378
  %v383 = vld [vmem:[%s1 + $0x68] sm:$0xff]
  %v384 = vld [vmem:[%s1 + $0x70] sm:$0xff]
  %v385 = vld [vmem:[%s1 + $0x78] sm:$0xff]
  %v386 = vld [vmem:[%s1 + $0x80] sm:$0xff]
  %v387 = vld [vmem:[%s1 + $0xcc] sm:$0x1]
  %v388 = vperm.slane %v387, 0
  %v390 = vsel %vm87, %v382, 0
  %392 = vmatpush.msra.mxu0 0.0
  %393 = vmatpush.msra.mxu0 0.0
  %394 = vmatpush.msra.mxu0 0.0
  %395 = vmatpush.msra.mxu0 0.0
  %396 = vmatpush.msra.mxu0 0.0
  %397 = vmatpush.msra.mxu0 0.0
  %398 = vmatpush.msra.mxu0 0.0
  %399 = vmatpush.msra.mxu0 0.0
  %400 = vmatpush.msra.mxu0 0.0
  %401 = vmatpush.msra.mxu0 0.0
  %402 = vmatpush.msra.mxu0 0.0
  %403 = vmatpush.msra.mxu0 0.0
  %404 = vmatpush.msra.mxu0 %v386
  %405 = vmatpush.msra.mxu0 %v385
  %406 = vmatpush.msra.mxu0 %v384
  %407 = vmatpush.msra.mxu0 %v383
  %408 = vmatmul.f32.gmra.mxu0 %v390
  %v409 = vpop.f32.mrf.mxu0
  %v410 = vadd.f32 %v388, %v409
  %411 = vdwg.mxu0
  %v412 = vmax.f32 %v410, 0.0
  %v413 = vld [vmem:[%s1 + $0x88] sm:$0xff]
  %v414 = vld [vmem:[%s1 + $0x90] sm:$0xff]
  %v415 = vld [vmem:[%s1 + $0x98] sm:$0xff]
  %v416 = vld [vmem:[%s1 + $0xa0] sm:$0xff]
  %v417 = vld [vmem:[%s1 + $0xcd] sm:$0x1]
  %v418 = vperm.slane %v417, 0
  %v420 = vsel %vm87, %v412, 0
  %422 = vmatpush.msra.mxu0 0.0
  %423 = vmatpush.msra.mxu0 0.0
  %424 = vmatpush.msra.mxu0 0.0
  %425 = vmatpush.msra.mxu0 0.0
  %426 = vmatpush.msra.mxu0 0.0
  %427 = vmatpush.msra.mxu0 0.0
  %428 = vmatpush.msra.mxu0 0.0
  %429 = vmatpush.msra.mxu0 0.0
  %430 = vmatpush.msra.mxu0 0.0
  %431 = vmatpush.msra.mxu0 0.0
  %432 = vmatpush.msra.mxu0 0.0
  %433 = vmatpush.msra.mxu0 0.0
  %434 = vmatpush.msra.mxu0 %v416
  %435 = vmatpush.msra.mxu0 %v415
  %436 = vmatpush.msra.mxu0 %v414
  %437 = vmatpush.msra.mxu0 %v413
  %438 = vmatmul.f32.gmra.mxu0 %v420
  %v439 = vpop.f32.mrf.mxu0
  %v440 = vadd.f32 %v418, %v439
  %441 = vdwg.mxu0
  %v442 = vmax.f32 %v440, 0.0
  %v443 = vld [vmem:[%s1 + $0xa8] sm:$0xff]
  %v444 = vld [vmem:[%s1 + $0xb0] sm:$0xff]
  %v445 = vld [vmem:[%s1 + $0xb8] sm:$0xff]
  %v446 = vld [vmem:[%s1 + $0xc0] sm:$0xff]
  %v447 = vld [vmem:[%s1 + $0xce] sm:$0x1]
  %v448 = vperm.slane %v447, 0
  %v450 = vsel %vm87, %v442, 0
  %452 = vmatpush.msra.mxu0 0.0
  %453 = vmatpush.msra.mxu0 0.0
  %454 = vmatpush.msra.mxu0 0.0
  %455 = vmatpush.msra.mxu0 0.0
  %456 = vmatpush.msra.mxu0 0.0
  %457 = vmatpush.msra.mxu0 0.0
  %458 = vmatpush.msra.mxu0 0.0
  %459 = vmatpush.msra.mxu0 0.0
  %460 = vmatpush.msra.mxu0 0.0
  %461 = vmatpush.msra.mxu0 0.0
  %462 = vmatpush.msra.mxu0 0.0
  %463 = vmatpush.msra.mxu0 0.0
  %464 = vmatpush.msra.mxu0 %v446
  %465 = vmatpush.msra.mxu0 %v445
  %466 = vmatpush.msra.mxu0 %v444
  %467 = vmatpush.msra.mxu0 %v443
  %468 = vmatmul.f32.gmra.mxu0 %v450
  %v469 = vpop.f32.mrf.mxu0
  %v470 = vadd.f32 %v448, %v469
  %471 = vdwg.mxu0
  %472 = vrot.lane.b32.xlu0 %v269, 8
  %v473 = vpop.permute.xlu0 %472
  %474 = vrot.lane.b32.xlu0 %v270, 8
  %v475 = vpop.permute.xlu0 %474
  %476 = vrot.lane.b32.xlu0 %v271, 8
  %v477 = vpop.permute.xlu0 %476
  %478 = vrot.lane.b32.xlu0 %v272, 8
  %v479 = vpop.permute.xlu0 %478
  %v484 = vsel %vm202, %v75, %v473
  %v485 = vsel %vm202, %v76, %v475
  %v486 = vsel %vm202, %v77, %v477
  %v487 = vsel %vm202, %v78, %v479
  %488 = vst.msk [vmem:[%s2] sm:$0xff] %vm207, %v484
  %489 = vst.msk [vmem:[%s2 + $0x8] sm:$0xff] %vm207, %v485
  %490 = vst.msk [vmem:[%s2 + $0x10] sm:$0xff] %vm207, %v486
  %491 = vst.msk [vmem:[%s2 + $0x18] sm:$0xff] %vm207, %v487
  %vm492 = vcmask 123904
  %493 = vst.msk [vmem:[%s2 + $0x20] sm:$0x3] %vm492, %v470
  // Predicated region
  $region10: #{encoder1d_forward.1} parent=0 // pred_check
    _
  $region11: #{encoder1d_forward.1} parent=0 // pred_check_branch
    %495 = sbr.rel (0) target = $region13
  $region12: #{encoder1d_forward.1} parent=0 // pred_region
    _
  $region13: #{encoder1d_forward.1} parent=0 // pred_fallthru
    _
  // Predicated region
  $region14: #{encoder1d_forward.1} parent=0 // pred_check
    _
  $region15: #{encoder1d_forward.1} parent=0 // pred_check_branch
    %497 = sbr.rel (0) target = $region17
  $region16: #{encoder1d_forward.1} parent=0 // pred_region
    _
  $region17: #{encoder1d_forward.1} parent=0 // pred_fallthru
    _

</llo_original>
